<compile_context>
chip_gen: v6e
topology: v6e:2x2x1
jax: 0.10.0
libtpu: 0.0.40
codegen_flags: <defaults>
</compile_context>

<pallas_src>
import jax
import jax.numpy as jnp
from jax.experimental import pallas as pl
from jax.experimental.pallas import tpu as pltpu

_NEG_INF = -1e30  # finite stand-in for -inf (no NaN on fully-masked rows)


# --------------------------------------------------------------------------
# Once-per-utterance: processed memory  benc = Ua(encoder_outputs)
# --------------------------------------------------------------------------
def _memory_projection_kernel(enc_ref, ua_ref, benc_ref):
    # enc_ref: (B*T, De), ua_ref: (De, H), benc_ref: (B*T, H)
    benc_ref[...] = jnp.dot(enc_ref[...], ua_ref[...],
                            preferred_element_type=jnp.float32)


@jax.jit
def prepare_memory(encoder_outputs, ua_t):
    """Compute encoded_text = Ua(encoder_outputs) once per utterance."""
    B, T, De = encoder_outputs.shape
    H = ua_t.shape[1]
    enc_flat = encoder_outputs.astype(jnp.float32).reshape(B * T, De)
    # TODO(synk): feed enc/Ua as bf16 (keep f32 accumulation) on v6e/v7x if the
    # accuracy budget allows (~1e-2); kept f32 here to hold the 1e-5 tolerance.
    benc_flat = pl.pallas_call(
        _memory_projection_kernel,
        out_shape=jax.ShapeDtypeStruct((B * T, H), jnp.float32),
    )(enc_flat, ua_t)
    return benc_flat.reshape(B, T, H)   # row-major no-op reshape


# --------------------------------------------------------------------------
# Per-decode-step attention kernel
# --------------------------------------------------------------------------
def _attention_step_kernel(len_ref, lh_ref, benc_ref, wa_ref, va_ref, out_ref):
    """Whole (tiny) step in a single grid point; batch in the sublane dim.

    Shapes seen inside the kernel:
      len_ref: (B,) int32 in SMEM (scalar prefetch)
      lh_ref:  (B, Dq)   benc_ref: (B, T, H)   wa_ref: (Dq, H)   va_ref: (B, H)
      out_ref: (B, OUT_W) lane-dense slab:
               [:, 0:H]        expectations
               [:, H:2H]       query a
               [:, 2H:2H+T]    scores
    """
    B, T, H = benc_ref.shape

    lh = lh_ref[...]                    # (B, Dq)
    benc = benc_ref[...]                # (B, T, H)  processed memory
    wa = wa_ref[...]                    # (Dq, H)
    va = va_ref[...]                    # (B, H)

    # query a = Wa(last_hidden.unsqueeze(1)) -> (B, H)
    a = jnp.dot(lh, wa, preferred_element_type=jnp.float32)

    # out = tanh(a + b) -> (B, T, H)  (sublane broadcast of a across T)
    out = jnp.tanh(a[:, None, :] + benc)

    # energy[b, t] = <out[b, t, :], va[b, :]>  -- VPU mul + lane reduce
    energy = jnp.sum(out * va[:, None, :], axis=-1)               # (B, T)

    # Rebuild the keep-mask in-kernel from SMEM lengths (no mask DMA).
    t_idx = jax.lax.broadcasted_iota(jnp.int32, (B, T), 1)
    b_idx = jax.lax.broadcasted_iota(jnp.int32, (B, T), 0)
    len_bt = jnp.zeros((B, T), jnp.int32)
    for b in range(B):                   # static unroll over (small) batch
        len_bt = jnp.where(b_idx == b, len_ref[b], len_bt)
    keep = t_idx < len_bt

    # attention_energies[~mask] = -inf (finite surrogate); softmax over T.
    energy = jnp.where(keep, energy, _NEG_INF)
    m = jnp.max(energy, axis=-1, keepdims=True)
    p = jnp.exp(energy - m)
    scores = p / jnp.sum(p, axis=-1, keepdims=True)                # (B, T)

    # expectations = bmm(scores, encoded_text): q=1, so use a VPU weighted sum
    # + sublane reduce instead of B separate M=1 MXU matmuls.
    expect = jnp.sum(scores[:, :, None] * benc, axis=1)            # (B, H)

    # Single lane-dense output slab -> one output writeback DMA.
    out_ref[...] = jnp.zeros_like(out_ref)
    out_ref[:, 0:H] = expect
    out_ref[:, H:2 * H] = a
    out_ref[:, 2 * H:2 * H + T] = scores


@jax.jit
def attention_step(last_hidden, benc, lengths, wa_t, va):
    """One decoder-step of VanillaAttention.forward (bahdanau, mlp=False)."""
    B, T, H = benc.shape
    Dq = last_hidden.shape[1]
    OUT_W = max(128, ((2 * H + T + 127) // 128) * 128)   # lane-dense slab width

    lh = last_hidden.astype(jnp.float32)
    lengths = lengths.astype(jnp.int32)

    # TODO(synk): at production B*T, add a grid over T (online softmax) with
    # dimension_semantics=("parallel", ...) so v7x can use both TensorCores and
    # the intermediates stay inside the 32 MiB scoped VMEM; the toy size is
    # strictly overhead-bound so it stays a single grid point here.
    # TODO(synk): if called once per decoder step, fuse with adjacent decoder
    # ops / keep Wa & va resident across calls instead of re-staging them.
    grid_spec = pltpu.PrefetchScalarGridSpec(
        num_scalar_prefetch=1,                 # lengths -> SMEM
        grid=(1,),
        in_specs=[
            pl.BlockSpec((B, Dq), lambda i, lens: (0, 0)),
            pl.BlockSpec((B, T, H), lambda i, lens: (0, 0, 0)),
            pl.BlockSpec((Dq, H), lambda i, lens: (0, 0)),
            pl.BlockSpec((B, H), lambda i, lens: (0, 0)),
        ],
        out_specs=pl.BlockSpec((B, OUT_W), lambda i, lens: (0, 0)),
    )

    slab = pl.pallas_call(
        _attention_step_kernel,
        out_shape=jax.ShapeDtypeStruct((B, OUT_W), jnp.float32),
        grid_spec=grid_spec,
        compiler_params=pltpu.CompilerParams(
            dimension_semantics=("arbitrary",)),
    )(lengths, lh, benc, wa_t, va)

    expectations = slab[:, 0:H]
    query = slab[:, H:2 * H].reshape(B, 1, H)
    scores = slab[:, 2 * H:2 * H + T]
    return expectations, scores, query


def prepare_params(wa, ua, va):
    """One-time parameter transform (hoisted out of the per-call path)."""
    wa_t = jnp.asarray(wa, jnp.float32).T   # (Dq, H)
    ua_t = jnp.asarray(ua, jnp.float32).T   # (De, H)
    va_f = jnp.asarray(va, jnp.float32)     # (B, H)
    return wa_t, ua_t, va_f


def vanilla_attention_bahdanau(last_hidden, encoder_outputs, lengths, wa_t, ua_t, va):
    """Full forward = once-per-utterance memory projection + one attention step."""
    benc = prepare_memory(encoder_outputs, ua_t)
    return attention_step(last_hidden, benc, lengths, wa_t, va)


# --------------------------------------------------------------------------
# Pure-JAX reference mirroring the PyTorch forward (bahdanau, mlp=False)
# --------------------------------------------------------------------------
def _reference(last_hidden, encoder_outputs, mask, wa, ua, va):
    a = last_hidden @ wa.T                                 # (B, H)
    benc = jnp.einsum('btd,hd->bth', encoder_outputs, ua)  # (B, T, H)
    out = jnp.tanh(a[:, None, :] + benc)                   # (B, T, H)
    energy = jnp.einsum('bth,bh->bt', out, va)             # (B, T)
    energy = jnp.where(mask[:, 0, :], energy, -jnp.inf)
    scores = jax.nn.softmax(energy, axis=-1)               # (B, T)
    exp = jnp.einsum('bt,bth->bh', scores, benc)           # (B, H)
    return exp, scores, a[:, None, :]


if __name__ == "__main__":
    # hparams: encoder_embedding_dim=32, E=32, n_mel_channels=16, batch_size=2
    B, T, Dq, De, H = 2, 8, 32, 16, 32

    key = jax.random.PRNGKey(0)
    k1, k2, k3, k4, k5 = jax.random.split(key, 5)

    last_hidden = jax.random.normal(k1, (B, Dq), dtype=jnp.float32)
    encoder_outputs = jax.random.normal(k2, (B, T, De), dtype=jnp.float32)

    wa = jax.random.normal(k3, (H, Dq), dtype=jnp.float32) * 0.1   # self.Wa.weight
    ua = jax.random.normal(k4, (H, De), dtype=jnp.float32) * 0.1   # self.Ua.weight
    va = jax.random.normal(k5, (B, H), dtype=jnp.float32) * 0.1    # self.va

    # Per-batch valid lengths: keep everything except the last 2 steps of batch 1.
    lengths = jnp.array([T, T - 2], dtype=jnp.int32)
    # Equivalent (B, 1, T) boolean mask, used only by the pure-JAX reference.
    mask = (jnp.arange(T)[None, :] < lengths[:, None])[:, None, :]

    # One-time weight prep.
    wa_t, ua_t, va_f = prepare_params(wa, ua, va)

    # Once per utterance.
    benc = prepare_memory(encoder_outputs, ua_t)
    # Once per decoder step.
    exp_p, sc_p, q_p = attention_step(last_hidden, benc, lengths, wa_t, va_f)
    jax.block_until_ready((exp_p, sc_p, q_p))

    exp_r, sc_r, q_r = _reference(last_hidden, encoder_outputs, mask, wa, ua, va)

    assert exp_p.shape == (B, H) and sc_p.shape == (B, T) and q_p.shape == (B, 1, H)
    assert jnp.allclose(exp_p, exp_r, atol=1e-5, rtol=1e-5)
    assert jnp.allclose(sc_p, sc_r, atol=1e-5, rtol=1e-5)
    assert jnp.allclose(q_p, q_r, atol=1e-5, rtol=1e-5)

    print("KERNEL_OK")
</pallas_src>

<mosaic_0001>
module attributes {stable_mosaic.version = 11 : i64} {
  func.func @_memory_projection_kernel(%arg0: memref<16x16xf32, #tpu.memory_space<vmem>>, %arg1: memref<16x32xf32, #tpu.memory_space<vmem>>, %arg2: memref<16x32xf32, #tpu.memory_space<vmem>>) attributes {dimension_semantics = [], scalar_prefetch = 0 : i64, scratch_operands = 0 : i64, tpu.core_type = #tpu.core_type<tc>} {
    %c0 = arith.constant 0 : index
    %c0_0 = arith.constant 0 : index
    %0 = vector.load %arg0[%c0, %c0_0] : memref<16x16xf32, #tpu.memory_space<vmem>>, vector<16x16xf32>
    %c0_1 = arith.constant 0 : index
    %c0_2 = arith.constant 0 : index
    %1 = vector.load %arg1[%c0_1, %c0_2] : memref<16x32xf32, #tpu.memory_space<vmem>>, vector<16x32xf32>
    %cst = arith.constant dense<0.000000e+00> : vector<16x32xf32>
    %2 = tpu.matmul %0, %1, %cst {dimension_numbers = #tpu.dot_dimension_numbers<[1], [0], [0], [1], [0, 0, 1, 1], [], []>} : vector<16x16xf32>, vector<16x32xf32>, vector<16x32xf32> -> vector<16x32xf32>
    %c0_3 = arith.constant 0 : index
    %c0_4 = arith.constant 0 : index
    %3 = vector.load %arg2[%c0_3, %c0_4] : memref<16x32xf32, #tpu.memory_space<vmem>>, vector<16x32xf32>
    tpu.vector_store %arg2[%c0_3, %c0_4], %2 {strides = array<i32>} : memref<16x32xf32, #tpu.memory_space<vmem>>, vector<16x32xf32>,
    return
  }
}

</mosaic_0001>

<llo_original>
// kernel: prepare_memory.1
$region0: #{prepare_memory.1}
  #allocation0 [shape = 'u32[]', space=smem, size = 0x4, offset = 0x4, fixed_abs, tag = 'smem constant byte address 0x4 - core index']
  #allocation1 [shape = 'u32[144,128]{1,0:T(1,128)}', space=vmem, size = 0x12000, scoped, tag = 'internal scratch']
  %s0 = inlined_call_operand.hbm [shape: f32[16,16], index: 0, kind: input, shape index: {}]
  %s1 = inlined_call_operand.hbm [shape: f32[16,32], index: 1, kind: input, shape index: {}]
  %s2 = inlined_call_operand.hbm [shape: f32[16,32], index: 2, kind: output, shape index: {}]
  %s3 = sld [smem:[#allocation0]]
  $region26: #{prepare_memory.1} parent=0
    _
  %s5 = ssub.s32 1, %s3
  %s6 = scalar_select 0, %s5, %s3
  $region1: #{prepare_memory.1} parent=0
    #allocation2 [shape = 'u8[8192]{0}', space=vmem, size = 0x2000, scoped, tag = 'input window, operand 0, single buffered']
    #allocation3 [shape = 's32[1]{0}', space=sflag, size = 0x4, scoped, tag = 'scoped memory for prepare_memory.1']
    #allocation4 [shape = 's32[1]{0}', space=sflag, size = 0x4, scoped, tag = 'scoped memory for prepare_memory.1']
    #allocation5 [shape = 'u8[8192]{0}', space=vmem, size = 0x2000, scoped, tag = 'input window, operand 1, single buffered']
    #allocation6 [shape = 's32[1]{0}', space=sflag, size = 0x4, scoped, tag = 'scoped memory for prepare_memory.1']
    #allocation7 [shape = 'u8[8192]{0}', space=vmem, size = 0x2000, scoped, tag = 'output window, operand 0, single buffered']
    %7 = vsyncpa [#allocation3], 0
    %8 = vsyncpa [#allocation6], 0
    %9 = vsyncpa [#allocation4], 0
    // Predicated region
    $region2: #{prepare_memory.1} parent=1 // pred_check
      _
    $region3: #{prepare_memory.1} parent=1 // pred_check_branch
      %11 = sbr.rel (0) target = $region5
    $region4: #{prepare_memory.1} parent=1 // pred_region
      %s13 = ssub.s32 256, 256
      %14 = vsyncadd [#allocation3], %s13
      %s15 = sshll.u32 [#allocation2], 4
      %s16 = int_to_ptr.vmem [resolvable:$true] %s15
      %21 = dma.hbm_to_vmem [thread:$0]  %s0, 256, %s16, [#allocation3], 128, 128, 8
    $region5: #{prepare_memory.1} parent=1 // pred_fallthru
      _
    // Predicated region
    $region6: #{prepare_memory.1} parent=1 // pred_check
      _
    $region7: #{prepare_memory.1} parent=1 // pred_check_branch
      %23 = sbr.rel (0) target = $region9
    $region8: #{prepare_memory.1} parent=1 // pred_region
      %s25 = ssub.s32 256, 256
      %26 = vsyncadd [#allocation6], %s25
      %s27 = sshll.u32 [#allocation5], 4
      %s28 = int_to_ptr.vmem [resolvable:$true] %s27
      %33 = dma.hbm_to_vmem [thread:$0]  %s1, 256, %s28, [#allocation6], 128, 128, 8
    $region9: #{prepare_memory.1} parent=1 // pred_fallthru
      _
    // Predicated region
    $region10: #{prepare_memory.1} parent=1 // pred_check
      _
    $region11: #{prepare_memory.1} parent=1 // pred_check_branch
      %35 = sbr.rel (0) target = $region13
    $region12: #{prepare_memory.1} parent=1 // pred_region
      %36 = dma.done [#allocation3], 256
    $region13: #{prepare_memory.1} parent=1 // pred_fallthru
      _
    // Predicated region
    $region14: #{prepare_memory.1} parent=1 // pred_check
      _
    $region15: #{prepare_memory.1} parent=1 // pred_check_branch
      %38 = sbr.rel (0) target = $region17
    $region16: #{prepare_memory.1} parent=1 // pred_region
      %39 = dma.done [#allocation6], 256
    $region17: #{prepare_memory.1} parent=1 // pred_fallthru
      _
    %v40 = vld [vmem:[#allocation2] sm:$0xff]
    %v41 = vld [vmem:[#allocation2 + $0x8] sm:$0xff]
    %v42 = vld [vmem:[#allocation5] sm:$0xff]
    %v43 = vld [vmem:[#allocation5 + $0x8] sm:$0xff]
    %vm44 = vcmask 130048
    %v46 = vsel %vm44, %v40, 0
    %v49 = vsel %vm44, %v41, 0
    %51 = vmatprep.subr.mxu0 0.0
    %52 = vmatpush1.msra.mxu0 0.0
    %53 = vmatprep.subr.mxu0 0.0
    %54 = vmatpush1.msra.mxu0 0.0
    %55 = vmatprep.subr.mxu0 0.0
    %56 = vmatpush1.msra.mxu0 0.0
    %57 = vmatprep.subr.mxu0 0.0
    %58 = vmatpush1.msra.mxu0 0.0
    %59 = vmatprep.subr.mxu0 0.0
    %60 = vmatpush1.msra.mxu0 0.0
    %61 = vmatprep.subr.mxu0 0.0
    %62 = vmatpush1.msra.mxu0 0.0
    %63 = vmatprep.subr.mxu0 0.0
    %64 = vmatpush1.msra.mxu0 0.0
    %65 = vmatprep.subr.mxu0 0.0
    %66 = vmatpush1.msra.mxu0 0.0
    %67 = vmatprep.subr.mxu0 0.0
    %68 = vmatpush1.msra.mxu0 0.0
    %69 = vmatprep.subr.mxu0 0.0
    %70 = vmatpush1.msra.mxu0 0.0
    %71 = vmatprep.subr.mxu0 0.0
    %72 = vmatpush1.msra.mxu0 0.0
    %73 = vmatprep.subr.mxu0 0.0
    %74 = vmatpush1.msra.mxu0 0.0
    %75 = vmatprep.subr.mxu0 0.0
    %76 = vmatpush1.msra.mxu0 0.0
    %77 = vmatprep.subr.mxu0 0.0
    %78 = vmatpush1.msra.mxu0 0.0
    %79 = vmatprep.subr.mxu0 0.0
    %80 = vmatpush1.msra.mxu0 %v43
    %81 = vmatprep.subr.mxu0 0.0
    %82 = vmatpush1.msra.mxu0 %v42
    %83 = vmatprep.subr.mxu0 0.0
    %84 = vmatpush2.msra.mxu0 0.0
    %85 = vmatprep.subr.mxu0 0.0
    %86 = vmatpush2.msra.mxu0 0.0
    %87 = vmatprep.subr.mxu0 0.0
    %88 = vmatpush2.msra.mxu0 0.0
    %89 = vmatprep.subr.mxu0 0.0
    %90 = vmatpush2.msra.mxu0 0.0
    %91 = vmatprep.subr.mxu0 0.0
    %92 = vmatpush2.msra.mxu0 0.0
    %93 = vmatprep.subr.mxu0 0.0
    %94 = vmatpush2.msra.mxu0 0.0
    %95 = vmatprep.subr.mxu0 0.0
    %96 = vmatpush2.msra.mxu0 0.0
    %97 = vmatprep.subr.mxu0 0.0
    %98 = vmatpush2.msra.mxu0 0.0
    %99 = vmatprep.subr.mxu0 0.0
    %100 = vmatpush2.msra.mxu0 0.0
    %101 = vmatprep.subr.mxu0 0.0
    %102 = vmatpush2.msra.mxu0 0.0
    %103 = vmatprep.subr.mxu0 0.0
    %104 = vmatpush2.msra.mxu0 0.0
    %105 = vmatprep.subr.mxu0 0.0
    %106 = vmatpush2.msra.mxu0 0.0
    %107 = vmatprep.subr.mxu0 0.0
    %108 = vmatpush2.msra.mxu0 0.0
    %109 = vmatprep.subr.mxu0 0.0
    %110 = vmatpush2.msra.mxu0 0.0
    %111 = vmatprep.subr.mxu0 0.0
    %112 = vmatpush2.msra.mxu0 0.0
    %113 = vmatprep.subr.mxu0 0.0
    %114 = vmatpush2.msra.mxu0 0.0
    %115 = vmatprep.mubr.f32.mxu0 0.0
    %116 = vmatmul.mubr.f32.gmra.mxu0 %v46
    %v117 = vpop.f32.mrf.mxu0
    %v118 = vadd.f32 0.0, %v117
    %v119 = vpop.f32.mrf.mxu0
    %120 = vmatprep.mubr.f32.mxu0 0.0
    %121 = vmatmul.mubr.f32.gmra.mxu0 %v49
    %v122 = vpop.f32.mrf.mxu0
    %v123 = vadd.f32 0.0, %v122
    %v124 = vpop.f32.mrf.mxu0
    %125 = vdwg.mxu0
    %vm126 = vcmask 261120
    %127 = vst.msk [vmem:[#allocation7] sm:$0xff] %vm126, %v118
    %128 = vst.msk [vmem:[#allocation7 + $0x8] sm:$0xff] %vm126, %v123
    // Predicated region
    $region18: #{prepare_memory.1} parent=1 // pred_check
      _
    $region19: #{prepare_memory.1} parent=1 // pred_check_branch
      %130 = sbr.rel (0) target = $region21
    $region20: #{prepare_memory.1} parent=1 // pred_region
      %s132 = ssub.s32 256, 256
      %133 = vsyncadd [#allocation4], %s132
      %s134 = sshll.u32 [#allocation7], 4
      %s135 = int_to_ptr.vmem [resolvable:$true] %s134
      %140 = dma.vmem_to_hbm [thread:$0]  %s135, 256, %s2, [#allocation4], 128, 128, 8
    $region21: #{prepare_memory.1} parent=1 // pred_fallthru
      _
    // Predicated region
    $region22: #{prepare_memory.1} parent=1 // pred_check
      _
    $region23: #{prepare_memory.1} parent=1 // pred_check_branch
      %142 = sbr.rel (0) target = $region25
    $region24: #{prepare_memory.1} parent=1 // pred_region
      %143 = dma.done [#allocation4], 256
    $region25: #{prepare_memory.1} parent=1 // pred_fallthru
      _
    %144 = vsyncpa [#allocation3], 1
    %145 = vsyncpa [#allocation6], 1
    %146 = vsyncpa [#allocation4], 1

</llo_original>
